<compile_context>
chip_gen: v5e
topology: v5e:2x2
jax: 0.10.0
libtpu: 0.0.40
codegen_flags: <defaults>
</compile_context>

<pallas_src>
import functools

import jax
import jax.numpy as jnp
from jax import lax
from jax.experimental import pallas as pl
from jax.experimental.pallas import tpu as pltpu


def _round_up(x, m):
    return (x + m - 1) // m * m


def _sc_partial_kernel(x_ref, y_ref, d2_ref, y2_ref, *, tm, f_pad, m_total, f_total):
    """One row-tile of the spectral-convergence partial sums.

    x_ref, y_ref : (tm, f_pad) f32 VMEM tiles of the flattened magnitude
                   spectrograms (rows = B * #frames, lanes = #freq_bins,
                   lane dim padded up to a multiple of 128 by the BlockSpec).
    d2_ref       : (1, 128) partial sum of (y - x)^2 for this tile (broadcast
                   across lanes -> dense vst).
    y2_ref       : (1, 128) partial sum of y^2 for this tile.
    """
    i = pl.program_id(0)

    x = x_ref[...]
    y = y_ref[...]

    # Mask out rows past the real row count (last tile) and lanes past the
    # real frequency-bin count (lane padding).  Overhanging block contents are
    # unspecified, so select 0 before reducing.
    row = lax.broadcasted_iota(jnp.int32, (tm, f_pad), 0) + i * tm
    col = lax.broadcasted_iota(jnp.int32, (tm, f_pad), 1)
    valid = (row < m_total) & (col < f_total)

    d = y - x
    d2 = jnp.where(valid, d * d, 0.0)
    y2 = jnp.where(valid, y * y, 0.0)

    ssd = jnp.sum(d2, keepdims=True)   # (1, 1)
    ssy = jnp.sum(y2, keepdims=True)   # (1, 1)
    d2_ref[...] = jnp.broadcast_to(ssd, (1, 128))
    y2_ref[...] = jnp.broadcast_to(ssy, (1, 128))


@jax.jit
def spectral_convergence_loss(x_mag, y_mag):
    """sc_loss = ||y_mag - x_mag||_F / ||y_mag||_F  (matches the PyTorch module)."""
    assert x_mag.shape == y_mag.shape
    f = x_mag.shape[-1]
    x2 = x_mag.reshape(-1, f).astype(jnp.float32)     # (M, F), M = B * #frames
    y2 = y_mag.reshape(-1, f).astype(jnp.float32)
    m = x2.shape[0]

    f_pad = _round_up(f, 128)                 # lane-dense frequency dimension
    tm = min(512, _round_up(m, 8))            # row tile: fits VMEM on v5e/v6e/v7x
    num_tiles = pl.cdiv(m, tm)

    kernel = functools.partial(
        _sc_partial_kernel, tm=tm, f_pad=f_pad, m_total=m, f_total=f)

    part_d, part_y = pl.pallas_call(
        kernel,
        grid=(num_tiles,),
        in_specs=[
            pl.BlockSpec((tm, f_pad), lambda i: (i, 0)),
            pl.BlockSpec((tm, f_pad), lambda i: (i, 0)),
        ],
        out_specs=(
            pl.BlockSpec((1, 128), lambda i: (i, 0)),
            pl.BlockSpec((1, 128), lambda i: (i, 0)),
        ),
        out_shape=(
            jax.ShapeDtypeStruct((num_tiles, 128), jnp.float32),
            jax.ShapeDtypeStruct((num_tiles, 128), jnp.float32),
        ),
        compiler_params=pltpu.CompilerParams(
            dimension_semantics=("parallel",),       # megacore-shardable on v7x
            vmem_limit_bytes=32 * 1024 * 1024,
        ),
    )(x2, y2)

    # Final scalar reduction of the per-tile partials (tiny) in plain JAX.
    ssd = jnp.sum(part_d[:, 0])
    ssy = jnp.sum(part_y[:, 0])
    return jnp.sqrt(ssd) / jnp.sqrt(ssy)


if __name__ == "__main__":
    # Small magnitude-spectrogram shapes consistent with the module:
    # B=2, #frames=16, #freq_bins=65 (e.g. a one-sided fft_size=128 STFT).
    key = jax.random.PRNGKey(0)
    kx, ky = jax.random.split(key)
    B, n_frames, n_freq = 2, 16, 65
    x_mag = jnp.abs(jax.random.normal(kx, (B, n_frames, n_freq), dtype=jnp.float32)) + 1e-3
    y_mag = jnp.abs(jax.random.normal(ky, (B, n_frames, n_freq), dtype=jnp.float32)) + 1e-3

    loss = spectral_convergence_loss(x_mag, y_mag)
    loss = jax.block_until_ready(loss)

    # Pure-JAX reference (Frobenius norm over all elements, like torch.norm p='fro').
    ref = jnp.linalg.norm((y_mag - x_mag).reshape(-1)) / jnp.linalg.norm(y_mag.reshape(-1))
    assert jnp.isfinite(loss)
    assert jnp.allclose(loss, ref, rtol=1e-5, atol=1e-6), (loss, ref)
    print("KERNEL_OK")
</pallas_src>

<mosaic_0001>
module attributes {stable_mosaic.version = 11 : i64} {
  func.func @_sc_partial_kernel(%arg0: i32, %arg1: memref<32x128xf32, #tpu.memory_space<vmem>>, %arg2: memref<32x128xf32, #tpu.memory_space<vmem>>, %arg3: memref<1x128xf32, #tpu.memory_space<vmem>>, %arg4: memref<1x128xf32, #tpu.memory_space<vmem>>) attributes {dimension_semantics = [#tpu.dimension_semantics<parallel>], iteration_bounds = array<i64: 1>, scalar_prefetch = 0 : i64, scratch_operands = 0 : i64, tpu.core_type = #tpu.core_type<tc>, window_params = [{transform_indices = @transform_0, window_bounds = array<i64: 32, 128>}, {transform_indices = @transform_1, window_bounds = array<i64: 32, 128>}, {transform_indices = @transform_2, window_bounds = array<i64: 1, 128>}, {transform_indices = @transform_3, window_bounds = array<i64: 1, 128>}]} {
    %c0 = arith.constant 0 : index
    %c0_0 = arith.constant 0 : index
    %0 = vector.load %arg1[%c0, %c0_0] : memref<32x128xf32, #tpu.memory_space<vmem>>, vector<32x128xf32>
    %c0_1 = arith.constant 0 : index
    %c0_2 = arith.constant 0 : index
    %1 = vector.load %arg2[%c0_1, %c0_2] : memref<32x128xf32, #tpu.memory_space<vmem>>, vector<32x128xf32>
    %2 = tpu.iota {dimensions = array<i32: 0>} : vector<32x128xi32>
    %c32_i32 = arith.constant 32 : i32
    %3 = arith.muli %arg0, %c32_i32 : i32
    %4 = vector.broadcast %3 : i32 to vector<32x128xi32>
    %5 = arith.addi %2, %4 : vector<32x128xi32>
    %6 = tpu.iota {dimensions = array<i32: 1>} : vector<32x128xi32>
    %c32_i32_3 = arith.constant 32 : i32
    %7 = vector.broadcast %c32_i32_3 : i32 to vector<32x128xi32>
    %8 = arith.cmpi slt, %5, %7 : vector<32x128xi32>
    %c65_i32 = arith.constant 65 : i32
    %9 = vector.broadcast %c65_i32 : i32 to vector<32x128xi32>
    %10 = arith.cmpi slt, %6, %9 : vector<32x128xi32>
    %11 = arith.andi %8, %10 : vector<32x128xi1>
    %12 = arith.subf %1, %0 : vector<32x128xf32>
    %13 = arith.mulf %12, %12 : vector<32x128xf32>
    %cst = arith.constant 0.000000e+00 : f32
    %14 = vector.broadcast %cst : f32 to vector<32x128xf32>
    %15 = arith.select %11, %13, %14 : vector<32x128xi1>, vector<32x128xf32>
    %16 = arith.mulf %1, %1 : vector<32x128xf32>
    %cst_4 = arith.constant 0.000000e+00 : f32
    %17 = vector.broadcast %cst_4 : f32 to vector<32x128xf32>
    %18 = arith.select %11, %16, %17 : vector<32x128xi1>, vector<32x128xf32>
    %19 = vector.shape_cast %15 : vector<32x128xf32> to vector<1x32x128xf32>
    %cst_5 = arith.constant dense<0.000000e+00> : vector<1xf32>
    %20 = vector.multi_reduction <add>, %19, %cst_5 [1, 2] : vector<1x32x128xf32> to vector<1xf32>
    %21 = vector.shape_cast %20 : vector<1xf32> to vector<1x1x1xf32>
    %22 = vector.extract %21[0, 0, 0] : f32 from vector<1x1x1xf32>
    %23 = vector.broadcast %22 : f32 to vector<1x1xf32>
    %24 = vector.shape_cast %18 : vector<32x128xf32> to vector<1x32x128xf32>
    %cst_6 = arith.constant dense<0.000000e+00> : vector<1xf32>
    %25 = vector.multi_reduction <add>, %24, %cst_6 [1, 2] : vector<1x32x128xf32> to vector<1xf32>
    %26 = vector.shape_cast %25 : vector<1xf32> to vector<1x1x1xf32>
    %27 = vector.extract %26[0, 0, 0] : f32 from vector<1x1x1xf32>
    %28 = vector.broadcast %27 : f32 to vector<1x1xf32>
    %29 = vector.shape_cast %23 : vector<1x1xf32> to vector<1x1xf32>
    %30 = vector.broadcast %29 : vector<1x1xf32> to vector<1x128xf32>
    %c0_7 = arith.constant 0 : index
    %c0_8 = arith.constant 0 : index
    %31 = vector.load %arg3[%c0_7, %c0_8] : memref<1x128xf32, #tpu.memory_space<vmem>>, vector<1x128xf32>
    tpu.vector_store %arg3[%c0_7, %c0_8], %30 {strides = array<i32>} : memref<1x128xf32, #tpu.memory_space<vmem>>, vector<1x128xf32>,
    %32 = vector.shape_cast %28 : vector<1x1xf32> to vector<1x1xf32>
    %33 = vector.broadcast %32 : vector<1x1xf32> to vector<1x128xf32>
    %c0_9 = arith.constant 0 : index
    %c0_10 = arith.constant 0 : index
    %34 = vector.load %arg4[%c0_9, %c0_10] : memref<1x128xf32, #tpu.memory_space<vmem>>, vector<1x128xf32>
    tpu.vector_store %arg4[%c0_9, %c0_10], %33 {strides = array<i32>} : memref<1x128xf32, #tpu.memory_space<vmem>>, vector<1x128xf32>,
    return
  }
  func.func @transform_0(%arg0: i32) -> (i32, i32) {
    %c0_i32 = arith.constant 0 : i32
    %c0_i32_0 = arith.constant 0 : i32
    return %arg0, %c0_i32 : i32, i32
  }
  func.func @transform_1(%arg0: i32) -> (i32, i32) {
    %c0_i32 = arith.constant 0 : i32
    %c0_i32_0 = arith.constant 0 : i32
    return %arg0, %c0_i32 : i32, i32
  }
  func.func @transform_2(%arg0: i32) -> (i32, i32) {
    %c0_i32 = arith.constant 0 : i32
    %c0_i32_0 = arith.constant 0 : i32
    return %arg0, %c0_i32 : i32, i32
  }
  func.func @transform_3(%arg0: i32) -> (i32, i32) {
    %c0_i32 = arith.constant 0 : i32
    %c0_i32_0 = arith.constant 0 : i32
    return %arg0, %c0_i32 : i32, i32
  }
}

</mosaic_0001>

<llo_original>
// kernel: spectral_convergence_loss.1
$region0: #{spectral_convergence_loss.1}
  #allocation0 [shape = 'u32[]', space=smem, size = 0x4, offset = 0x4, fixed_abs, tag = 'smem constant byte address 0x4 - core index']
  #allocation1 [shape = 'u32[72,128]{1,0:T(1,128)}', space=vmem, size = 0x9000, scoped, tag = 'internal scratch']
  %s0 = inlined_call_operand.hbm [shape: f32[32,65], index: 0, kind: input, shape index: {}]
  %s1 = inlined_call_operand.hbm [shape: f32[32,65], index: 1, kind: input, shape index: {}]
  %s2 = inlined_call_operand.vmem [shape: f32[1,128], index: 2, kind: output, shape index: {0}]
  %s3 = inlined_call_operand.vmem [shape: f32[1,128], index: 3, kind: output, shape index: {1}]
  %4 = xla_tuple %s2, %s3
  %s5 = sld [smem:[#allocation0]]
  $region34: #{spectral_convergence_loss.1} parent=0
    _
  %s7 = ssub.s32 1, %s5
  %s8 = scalar_select 0, %s7, %s5
  $region1: #{spectral_convergence_loss.1} parent=0
    #allocation2 [shape = 'u8[16384]{0}', space=vmem, size = 0x4000, scoped, tag = 'input window, operand 0, single buffered']
    #allocation3 [shape = 's32[1]{0}', space=sflag, size = 0x4, scoped, tag = 'scoped memory for spectral_convergence_loss.1']
    #allocation4 [shape = 'u8[16384]{0}', space=vmem, size = 0x4000, scoped, tag = 'input window, operand 1, single buffered']
    #allocation5 [shape = 's32[1]{0}', space=sflag, size = 0x4, scoped, tag = 'scoped memory for spectral_convergence_loss.1']
    %9 = vsyncpa [#allocation3], 0
    %10 = vsyncpa [#allocation5], 0
    // Predicated region
    $region2: #{spectral_convergence_loss.1} parent=1 // pred_check
      _
    $region3: #{spectral_convergence_loss.1} parent=1 // pred_check_branch
      %12 = sbr.rel (0) target = $region5
    $region4: #{spectral_convergence_loss.1} parent=1 // pred_region
      %14 = vsyncadd [#allocation3], 0
      %s15 = sshll.u32 %s0, 4
      %s16 = int_to_ptr.hbm [resolvable:$true] %s15
      %s17 = sshll.u32 [#allocation2], 4
      %s18 = int_to_ptr.vmem [resolvable:$true] %s17
      %23 = dma.hbm_to_vmem [thread:$0]  %s16, 512, %s18, [#allocation3], 128, 128, 8
    $region5: #{spectral_convergence_loss.1} parent=1 // pred_fallthru
      _
    // Predicated region
    $region6: #{spectral_convergence_loss.1} parent=1 // pred_check
      _
    $region7: #{spectral_convergence_loss.1} parent=1 // pred_check_branch
      %25 = sbr.rel (0) target = $region9
    $region8: #{spectral_convergence_loss.1} parent=1 // pred_region
      %27 = vsyncadd [#allocation5], 0
      %s28 = sshll.u32 %s1, 4
      %s29 = int_to_ptr.hbm [resolvable:$true] %s28
      %s30 = sshll.u32 [#allocation4], 4
      %s31 = int_to_ptr.vmem [resolvable:$true] %s30
      %36 = dma.hbm_to_vmem [thread:$0]  %s29, 512, %s31, [#allocation5], 128, 128, 8
    $region9: #{spectral_convergence_loss.1} parent=1 // pred_fallthru
      _
    // Predicated region
    $region10: #{spectral_convergence_loss.1} parent=1 // pred_check
      _
    $region11: #{spectral_convergence_loss.1} parent=1 // pred_check_branch
      %38 = sbr.rel (0) target = $region13
    $region12: #{spectral_convergence_loss.1} parent=1 // pred_region
      %40 = dma.done [#allocation3], 512
    $region13: #{spectral_convergence_loss.1} parent=1 // pred_fallthru
      _
    // Predicated region
    $region14: #{spectral_convergence_loss.1} parent=1 // pred_check
      _
    $region15: #{spectral_convergence_loss.1} parent=1 // pred_check_branch
      %42 = sbr.rel (0) target = $region17
    $region16: #{spectral_convergence_loss.1} parent=1 // pred_region
      %44 = dma.done [#allocation5], 512
    $region17: #{spectral_convergence_loss.1} parent=1 // pred_fallthru
      _
    %v45 = vld [vmem:[#allocation2] sm:$0xff]
    %v46 = vld [vmem:[#allocation2 + $0x8] sm:$0xff]
    %v47 = vld [vmem:[#allocation2 + $0x10] sm:$0xff]
    %v48 = vld [vmem:[#allocation2 + $0x18] sm:$0xff]
    %v49 = vld [vmem:[#allocation4] sm:$0xff]
    %v50 = vld [vmem:[#allocation4 + $0x8] sm:$0xff]
    %v51 = vld [vmem:[#allocation4 + $0x10] sm:$0xff]
    %v52 = vld [vmem:[#allocation4 + $0x18] sm:$0xff]
    %v53 = vlaneseq
    %v54 = vshrl.u32 %v53, 7
    %v55 = vadd.s32 %v54, 8
    %v56 = vadd.s32 %v54, 16
    %v57 = vadd.s32 %v54, 24
    %s58 = smul.u32 0, 32
    %v59 = vstv %s58
    %v60 = vadd.s32 %v54, %v59
    %v61 = vadd.s32 %v55, %v59
    %v62 = vadd.s32 %v56, %v59
    %v63 = vadd.s32 %v57, %v59
    %v64 = vlaneseq
    %v65 = vand.u32 %v64, 127
    %vm66 = vcmp.lt.s32.totalorder %v60, 32
    %vm67 = vcmp.lt.s32.totalorder %v61, 32
    %vm68 = vcmp.lt.s32.totalorder %v62, 32
    %vm69 = vcmp.lt.s32.totalorder %v63, 32
    %vm70 = vcmp.lt.s32.totalorder %v65, 65
    %vm71 = vmand %vm66, %vm70
    %vm72 = vmand %vm67, %vm70
    %vm73 = vmand %vm68, %vm70
    %vm74 = vmand %vm69, %vm70
    %v75 = vsub.f32 %v49, %v45
    %v76 = vsub.f32 %v50, %v46
    %v77 = vsub.f32 %v51, %v47
    %v78 = vsub.f32 %v52, %v48
    %v79 = vmul.f32 %v75, %v75
    %v80 = vmul.f32 %v76, %v76
    %v81 = vmul.f32 %v77, %v77
    %v82 = vmul.f32 %v78, %v78
    %v83 = vsel %vm71, %v79, 0.0
    %v84 = vsel %vm72, %v80, 0.0
    %v85 = vsel %vm73, %v81, 0.0
    %v86 = vsel %vm74, %v82, 0.0
    %v87 = vmul.f32 %v49, %v49
    %v88 = vmul.f32 %v50, %v50
    %v89 = vmul.f32 %v51, %v51
    %v90 = vmul.f32 %v52, %v52
    %v91 = vsel %vm71, %v87, 0.0
    %v92 = vsel %vm72, %v88, 0.0
    %v93 = vsel %vm73, %v89, 0.0
    %v94 = vsel %vm74, %v90, 0.0
    %v95 = vadd.f32 %v83, %v84
    %v96 = vadd.f32 %v95, %v85
    %v97 = vadd.f32 %v96, %v86
    %98 = vadd.xlane.f32.xlu0 %v97
    %v99 = vpop.xlane.xlu0 %98
    %v100 = vrot.slane %v99, 4
    %v101 = vadd.f32 %v99, %v100
    %v102 = vrot.slane %v101, 2
    %v103 = vadd.f32 %v101, %v102
    %v104 = vrot.slane %v103, 1
    %v105 = vadd.f32 %v103, %v104
    %s106 = vtos %v105
    %v107 = vadd.f32 %v91, %v92
    %v108 = vadd.f32 %v107, %v93
    %v109 = vadd.f32 %v108, %v94
    %110 = vadd.xlane.f32.xlu0 %v109
    %v111 = vpop.xlane.xlu0 %110
    %v112 = vrot.slane %v111, 4
    %v113 = vadd.f32 %v111, %v112
    %v114 = vrot.slane %v113, 2
    %v115 = vadd.f32 %v113, %v114
    %v116 = vrot.slane %v115, 1
    %v117 = vadd.f32 %v115, %v116
    %s118 = vtos %v117
    %v119 = vstv %s106
    %120 = vst [vmem:[%s2] sm:$0x1] %v119
    %v121 = vstv %s118
    %122 = vst [vmem:[%s3] sm:$0x1] %v121
    // Predicated region
    $region18: #{spectral_convergence_loss.1} parent=1 // pred_check
      _
    $region19: #{spectral_convergence_loss.1} parent=1 // pred_check_branch
      %124 = sbr.rel (0) target = $region21
    $region20: #{spectral_convergence_loss.1} parent=1 // pred_region
      _
    $region21: #{spectral_convergence_loss.1} parent=1 // pred_fallthru
      _
    // Predicated region
    $region22: #{spectral_convergence_loss.1} parent=1 // pred_check
      _
    $region23: #{spectral_convergence_loss.1} parent=1 // pred_check_branch
      %126 = sbr.rel (0) target = $region25
    $region24: #{spectral_convergence_loss.1} parent=1 // pred_region
      _
    $region25: #{spectral_convergence_loss.1} parent=1 // pred_fallthru
      _
    // Predicated region
    $region26: #{spectral_convergence_loss.1} parent=1 // pred_check
      _
    $region27: #{spectral_convergence_loss.1} parent=1 // pred_check_branch
      %128 = sbr.rel (0) target = $region29
    $region28: #{spectral_convergence_loss.1} parent=1 // pred_region
      _
    $region29: #{spectral_convergence_loss.1} parent=1 // pred_fallthru
      _
    // Predicated region
    $region30: #{spectral_convergence_loss.1} parent=1 // pred_check
      _
    $region31: #{spectral_convergence_loss.1} parent=1 // pred_check_branch
      %130 = sbr.rel (0) target = $region33
    $region32: #{spectral_convergence_loss.1} parent=1 // pred_region
      _
    $region33: #{spectral_convergence_loss.1} parent=1 // pred_fallthru
      _
    %131 = vsyncpa [#allocation3], 1
    %132 = vsyncpa [#allocation5], 1

</llo_original>
